<compile_context>
chip_gen: v7x
topology: tpu7x:2x2x1
jax: 0.10.0
libtpu: 0.0.40
codegen_flags: <defaults>
</compile_context>

<pallas_src>
import jax
import jax.numpy as jnp
from jax.experimental import pallas as pl
from jax.experimental.pallas import tpu as pltpu


def _physical_vmem_bytes() -> int:
    """Best-effort physical VMEM per TensorCore; conservative fallback."""
    try:
        info = pltpu.get_tpu_info()
        v = getattr(info, "vmem_capacity_bytes", None)
        if v:
            return int(v)
    except Exception:
        pass
    return 64 << 20  # v7x-sized conservative default


def _plan_k_tiling(hw, bc, itemsize, input_budget_bytes, splits):
    """Pick (tk, num_k, hw_padded).

    tk is a multiple of 128; num_k is a multiple of `splits`;
    hw_padded = num_k * tk >= hw.  tk targets >= ~8 MiB of combined (x, t)
    bytes per grid step but stays under the VMEM input budget
    (2 tensors x 2 pipeline buffers x (bc, tk)).
    """
    per_col_bytes = 2 * 2 * bc * itemsize            # both inputs, double-buffered
    cap = max(128, input_budget_bytes // per_col_bytes)
    target = max(2048, (8 << 20) // (2 * bc * itemsize))
    tk_max = max(128, (min(cap, target) // 128) * 128)

    num_k = -(-hw // tk_max)                         # ceil(hw / tk_max)
    num_k = -(-num_k // splits) * splits             # round up to multiple of splits
    per_tile = -(-hw // num_k)                       # ceil(hw / num_k)
    tk = -(-per_tile // 128) * 128                   # round up to multiple of 128
    hw_padded = num_k * tk
    return tk, num_k, hw_padded


def _make_scalar_loss_kernel(inv_gram_norm, inv_mse_norm, mxu_bf16):
    """Single-core path: K-tiled accumulation, scalar loss written to SMEM."""

    def kernel(x_ref, t_ref, loss_ref, acc_ref):
        k = pl.program_id(0)

        @pl.when(k == 0)
        def _init():
            acc_ref[...] = jnp.zeros_like(acc_ref)

        x = x_ref[...]
        t = t_ref[...]
        d = x - t
        s = x + t
        if mxu_bf16:
            d = d.astype(jnp.bfloat16)
            s = s.astype(jnp.bfloat16)
        # A_k = d @ s^T accumulated over K tiles -> (BC, BC) f32.
        # (q@k^T-style contraction; MXU handles it natively, no per-step XLU
        #  transpose observed for this pattern.)
        acc_ref[...] += jnp.einsum(
            "ik,jk->ij", d, s, preferred_element_type=jnp.float32
        )

        @pl.when(k == pl.num_programs(0) - 1)
        def _finalize():
            a = acc_ref[...]
            # (A + A^T)/2 == Gram(x)_raw - Gram(t)_raw ; scale once.
            diff = (a + a.T) * (0.5 * inv_gram_norm)
            # MSELoss(reduction='mean') over the (BC, BC) Gram matrices.
            loss_ref[0, 0] = jnp.sum(diff * diff) * inv_mse_norm

    return kernel


def _make_partial_gram_kernel(mxu_bf16):
    """Core-split path: each c-slice of the grid emits its partial (BC, BC)
    unnormalized Gram-difference accumulator; the tiny epilogue runs in jnp."""

    def kernel(x_ref, t_ref, out_ref):
        k = pl.program_id(1)

        @pl.when(k == 0)
        def _init():
            out_ref[...] = jnp.zeros_like(out_ref)

        x = x_ref[...]
        t = t_ref[...]
        d = x - t
        s = x + t
        if mxu_bf16:
            d = d.astype(jnp.bfloat16)
            s = s.astype(jnp.bfloat16)
        contrib = jnp.einsum("ik,jk->ij", d, s, preferred_element_type=jnp.float32)
        out_ref[0, :, :] = out_ref[0, :, :] + contrib

    return kernel


def style_loss_forward(x, target, *, tk=None, core_splits=None, mxu_bf16=False):
    """Replicates Style_Loss.forward.

    Args:
      x:           (B, C, H, W) input feature map (NCHW).
      target:      (B, C, H, W) detached target feature map (NCHW).
      tk:          optional manual K-tile size (multiple of 128).
      core_splits: 1 (single-core SMEM-scalar path) or 2 (dual-TC split,
                   auto-selected on v7x-like chips).
      mxu_bf16:    cast MXU operands to bf16 (faster, ~1e-2 rel. loss error).

    Returns:
      out:  clone of the input (same values/shape/dtype).
      loss: scalar float32 style loss = MSE(Gram(x), Gram(target)).
    """
    B, C, H, W = x.shape
    assert target.shape == x.shape, "target must match input shape"
    BC, HW = B * C, H * W

    itemsize = jnp.dtype(x.dtype).itemsize
    inv_gram_norm = 1.0 / float(B * C * H * W)
    inv_mse_norm = 1.0 / float(BC * BC)

    phys_vmem = _physical_vmem_bytes()
    is_small_vmem = phys_vmem <= (65 << 20)          # v7x-like: 64 MiB per TC
    vmem_cap = (52 << 20) if is_small_vmem else (100 << 20)

    if core_splits is None:
        core_splits = 2 if is_small_vmem else 1      # v7x has 2 TCs per chip

    acc_bytes = BC * BC * 4
    assert acc_bytes <= vmem_cap // 3, (
        "BC too large for the monolithic (BC, BC) accumulator; "
        "output blocking is not implemented.")

    input_budget = max(int(0.6 * vmem_cap) - 2 * acc_bytes, 4 << 20)

    if tk is None:
        tk, num_k, hw_padded = _plan_k_tiling(
            HW, BC, itemsize, input_budget, core_splits)
    else:
        assert tk % 128 == 0, "manual tk must be a multiple of 128"
        num_k = -(-HW // tk)
        num_k = -(-num_k // core_splits) * core_splits
        hw_padded = num_k * tk

    # Glue: flatten to (B*C, H*W) like input.view(B*C, H*W); zero-pad HW up to
    # num_k * tk (padded columns have d = s = 0 -> contribute exactly 0).
    x_flat = x.reshape(BC, HW)
    t_flat = target.reshape(BC, HW)
    if hw_padded != HW:
        pad = ((0, 0), (0, hw_padded - HW))
        x_flat = jnp.pad(x_flat, pad)
        t_flat = jnp.pad(t_flat, pad)

    est_vmem = 2 * 2 * BC * tk * itemsize + 2 * acc_bytes
    vmem_limit = int(min(vmem_cap, max(32 << 20, 2 * est_vmem)))

    cost = pl.CostEstimate(
        flops=2 * BC * BC * hw_padded + 4 * BC * hw_padded,
        transcendentals=0,
        bytes_accessed=2 * BC * hw_padded * itemsize + 4,
    )

    if core_splits == 1:
        kernel = _make_scalar_loss_kernel(inv_gram_norm, inv_mse_norm, mxu_bf16)
        loss = pl.pallas_call(
            kernel,
            out_shape=jax.ShapeDtypeStruct((1, 1), jnp.float32),
            grid_spec=pltpu.PrefetchScalarGridSpec(
                num_scalar_prefetch=0,
                grid=(num_k,),
                in_specs=[
                    pl.BlockSpec((BC, tk), lambda k: (0, k)),
                    pl.BlockSpec((BC, tk), lambda k: (0, k)),
                ],
                out_specs=pl.BlockSpec(memory_space=pltpu.MemorySpace.SMEM),
                scratch_shapes=[pltpu.VMEM((BC, BC), jnp.float32)],
            ),
            compiler_params=pltpu.CompilerParams(
                dimension_semantics=("arbitrary",),
                vmem_limit_bytes=vmem_limit,
            ),
            cost_estimate=cost,
        )(x_flat, t_flat)
        loss = loss[0, 0]
    else:
        nk_per = num_k // core_splits
        kernel = _make_partial_gram_kernel(mxu_bf16)
        partials = pl.pallas_call(
            kernel,
            out_shape=jax.ShapeDtypeStruct((core_splits, BC, BC), jnp.float32),
            grid_spec=pltpu.PrefetchScalarGridSpec(
                num_scalar_prefetch=0,
                grid=(core_splits, nk_per),
                in_specs=[
                    pl.BlockSpec((BC, tk), lambda c, k: (0, c * nk_per + k)),
                    pl.BlockSpec((BC, tk), lambda c, k: (0, c * nk_per + k)),
                ],
                out_specs=pl.BlockSpec((1, BC, BC), lambda c, k: (c, 0, 0)),
            ),
            compiler_params=pltpu.CompilerParams(
                dimension_semantics=("parallel", "arbitrary"),
                vmem_limit_bytes=vmem_limit,
            ),
            cost_estimate=cost,
        )(x_flat, t_flat)
        a = partials.sum(axis=0)
        diff = (a + a.T) * (0.5 * inv_gram_norm)
        loss = jnp.sum(diff * diff) * inv_mse_norm

    # forward() returns input.clone(); immutable JAX array == the clone.
    out = x
    return out, loss


def _reference(x, target):
    B, C, H, W = x.shape
    BC, HW = B * C, H * W

    def gram(f):
        f = f.reshape(BC, HW).astype(jnp.float32)
        return (f @ f.T) / float(B * C * H * W)

    return jnp.mean((gram(x) - gram(target)) ** 2)


if __name__ == "__main__":
    # Case 1: small NCHW shapes with lane-aligned H*W = 256.
    B, C, H, W = 2, 4, 16, 16
    kx, kt = jax.random.split(jax.random.PRNGKey(0))
    x = jax.random.normal(kx, (B, C, H, W), dtype=jnp.float32)
    target = jax.random.normal(kt, (B, C, H, W), dtype=jnp.float32)
    ref_loss = _reference(x, target)

    # Auto-planned tiling / core split for whatever chip we're on.
    out, loss = jax.block_until_ready(style_loss_forward(x, target))
    assert out.shape == x.shape and out.dtype == x.dtype
    assert jnp.allclose(out, x)
    assert jnp.allclose(loss, ref_loss, rtol=1e-4, atol=1e-7), (loss, ref_loss)

    # Force the multi-K-step single-core (SMEM-scalar) path.
    _, loss1 = jax.block_until_ready(
        style_loss_forward(x, target, tk=128, core_splits=1))
    assert jnp.allclose(loss1, ref_loss, rtol=1e-4, atol=1e-7), (loss1, ref_loss)

    # Force the core-split (partial-Gram + jnp epilogue) path; correct on any
    # chip, only faster on v7x (2 TCs).
    _, loss2 = jax.block_until_ready(
        style_loss_forward(x, target, tk=128, core_splits=2))
    assert jnp.allclose(loss2, ref_loss, rtol=1e-4, atol=1e-7), (loss2, ref_loss)

    # Optional bf16 MXU-operand fast path — looser tolerance.
    _, loss3 = jax.block_until_ready(
        style_loss_forward(x, target, mxu_bf16=True))
    assert jnp.allclose(loss3, ref_loss, rtol=5e-2, atol=1e-4), (loss3, ref_loss)

    # Case 2: H*W = 100 (not a multiple of 128) exercises the zero-pad path.
    B2, C2, H2, W2 = 2, 4, 10, 10
    kx2, kt2 = jax.random.split(jax.random.PRNGKey(1))
    x2 = jax.random.normal(kx2, (B2, C2, H2, W2), dtype=jnp.float32)
    t2 = jax.random.normal(kt2, (B2, C2, H2, W2), dtype=jnp.float32)
    ref2 = _reference(x2, t2)
    _, lossp = jax.block_until_ready(style_loss_forward(x2, t2))
    assert jnp.allclose(lossp, ref2, rtol=1e-4, atol=1e-7), (lossp, ref2)

    print("KERNEL_OK")
</pallas_src>

<mosaic_0001>
module attributes {stable_mosaic.version = 11 : i64} {
  func.func @kernel(%arg0: i32, %arg1: i32, %arg2: memref<8x128xf32, #tpu.memory_space<vmem>>, %arg3: memref<8x128xf32, #tpu.memory_space<vmem>>, %arg4: memref<1x8x8xf32, #tpu.memory_space<vmem>>) attributes {dimension_semantics = [#tpu.dimension_semantics<parallel>, #tpu.dimension_semantics<arbitrary>], iteration_bounds = array<i64: 2, 1>, scalar_prefetch = 0 : i64, scratch_operands = 0 : i64, tpu.core_type = #tpu.core_type<tc>, window_params = [{transform_indices = @transform_0, window_bounds = array<i64: 8, 128>}, {transform_indices = @transform_1, window_bounds = array<i64: 8, 128>}, {transform_indices = @transform_2, window_bounds = array<i64: 1, 8, 8>}]} {
    %c0_i32 = arith.constant 0 : i32
    %0 = arith.cmpi eq, %arg1, %c0_i32 : i32
    %1 = arith.extui %0 : i1 to i32
    %c0_i32_0 = arith.constant 0 : i32
    %2 = arith.cmpi ne, %1, %c0_i32_0 : i32
    scf.if %2 {
      %cst_10 = arith.constant 0.000000e+00 : f32
      %14 = vector.broadcast %cst_10 : f32 to vector<1x8x8xf32>
      %c0_11 = arith.constant 0 : index
      %c0_12 = arith.constant 0 : index
      %c0_13 = arith.constant 0 : index
      %15 = vector.load %arg4[%c0_11, %c0_12, %c0_13] : memref<1x8x8xf32, #tpu.memory_space<vmem>>, vector<1x8x8xf32>
      tpu.vector_store %arg4[%c0_11, %c0_12, %c0_13], %14 {strides = array<i32>} : memref<1x8x8xf32, #tpu.memory_space<vmem>>, vector<1x8x8xf32>,
    } else {
    }
    %c0 = arith.constant 0 : index
    %c0_1 = arith.constant 0 : index
    %3 = vector.load %arg2[%c0, %c0_1] : memref<8x128xf32, #tpu.memory_space<vmem>>, vector<8x128xf32>
    %c0_2 = arith.constant 0 : index
    %c0_3 = arith.constant 0 : index
    %4 = vector.load %arg3[%c0_2, %c0_3] : memref<8x128xf32, #tpu.memory_space<vmem>>, vector<8x128xf32>
    %5 = arith.subf %3, %4 : vector<8x128xf32>
    %6 = arith.addf %3, %4 : vector<8x128xf32>
    "tpu.trace_start"() <{level = 10 : i32, message = "ik,jk->ij"}> : () -> ()
    %cst = arith.constant dense<0.000000e+00> : vector<8x8xf32>
    %7 = tpu.matmul %5, %6, %cst {dimension_numbers = #tpu.dot_dimension_numbers<[1], [1], [0], [0], [0, 0, 1, 0], [], []>} : vector<8x128xf32>, vector<8x128xf32>, vector<8x8xf32> -> vector<8x8xf32>
    "tpu.trace_stop"() : () -> ()
    %c0_4 = arith.constant 0 : index
    %c0_5 = arith.constant 0 : index
    %c0_6 = arith.constant 0 : index
    %8 = vector.load %arg4[%c0_4, %c0_5, %c0_6] : memref<1x8x8xf32, #tpu.memory_space<vmem>>, vector<1x8x8xf32>
    %9 = vector.shape_cast %8 : vector<1x8x8xf32> to vector<8x8xf32>
    %10 = arith.addf %9, %7 : vector<8x8xf32>
    %c0_7 = arith.constant 0 : index
    %c0_8 = arith.constant 0 : index
    %c0_9 = arith.constant 0 : index
    %11 = vector.load %arg4[%c0_7, %c0_8, %c0_9] : memref<1x8x8xf32, #tpu.memory_space<vmem>>, vector<1x8x8xf32>
    %12 = vector.shape_cast %11 : vector<1x8x8xf32> to vector<8x8xf32>
    %13 = vector.shape_cast %10 : vector<8x8xf32> to vector<1x8x8xf32>
    tpu.vector_store %arg4[%c0_7, %c0_8, %c0_9], %13 {strides = array<i32>} : memref<1x8x8xf32, #tpu.memory_space<vmem>>, vector<1x8x8xf32>,
    return
  }
  func.func @transform_0(%arg0: i32, %arg1: i32) -> (i32, i32) {
    %c1_i32 = arith.constant 1 : i32
    %0 = arith.muli %arg0, %c1_i32 : i32
    %1 = arith.addi %0, %arg1 : i32
    %c0_i32 = arith.constant 0 : i32
    %c0_i32_0 = arith.constant 0 : i32
    return %c0_i32, %1 : i32, i32
  }
  func.func @transform_1(%arg0: i32, %arg1: i32) -> (i32, i32) {
    %c1_i32 = arith.constant 1 : i32
    %0 = arith.muli %arg0, %c1_i32 : i32
    %1 = arith.addi %0, %arg1 : i32
    %c0_i32 = arith.constant 0 : i32
    %c0_i32_0 = arith.constant 0 : i32
    return %c0_i32, %1 : i32, i32
  }
  func.func @transform_2(%arg0: i32, %arg1: i32) -> (i32, i32, i32) {
    %c0_i32 = arith.constant 0 : i32
    %c0_i32_0 = arith.constant 0 : i32
    %c0_i32_1 = arith.constant 0 : i32
    return %arg0, %c0_i32, %c0_i32_0 : i32, i32, i32
  }
}

</mosaic_0001>

<llo_original>
// kernel: tpu_custom_call.1
$region0: #{tpu_custom_call.1}
  #allocation0 [shape = 'u32[]', space=smem, size = 0x4, offset = 0x4, fixed_abs, tag = 'smem constant byte address 0x4 - core index']
  #allocation1 [shape = 'u32[144,128]{1,0:T(1,128)}', space=vmem, size = 0x12000, scoped, tag = 'internal scratch']
  %s0 = inlined_call_operand.hbm [shape: f32[8,256], index: 0, kind: input, shape index: {}]
  %s1 = inlined_call_operand.hbm [shape: f32[8,256], index: 1, kind: input, shape index: {}]
  %s2 = inlined_call_operand.hbm [shape: f32[2,8,8], index: 2, kind: output, shape index: {}]
  %s3 = sld [smem:[#allocation0]]
  $region53: #{tpu_custom_call.1} parent=0
    _
  %s5 = ssub.s32 1, %s3
  %s6 = scalar_select 0, %s5, %s3
  $region1: #{tpu_custom_call.1} parent=0
    #allocation2 [shape = 'u8[8192]{0}', space=vmem, size = 0x2000, scoped, tag = 'input window, operand 0']
    #allocation3 [shape = 's32[2]{0}', space=sflag, size = 0x8, scoped, tag = 'scoped memory for tpu_custom_call.1']
    #allocation4 [shape = 's32[2]{0}', space=sflag, size = 0x8, scoped, tag = 'scoped memory for tpu_custom_call.1']
    #allocation5 [shape = 'u8[8192]{0}', space=vmem, size = 0x2000, scoped, tag = 'input window, operand 1']
    #allocation6 [shape = 's32[2]{0}', space=sflag, size = 0x8, scoped, tag = 'scoped memory for tpu_custom_call.1']
    #allocation7 [shape = 'u8[8192]{0}', space=vmem, size = 0x2000, scoped, tag = 'output window, operand 0']
    %7 = vsyncpa [#allocation3], 0
    %s8 = scalar_lea.sflag [#allocation3], 1
    %9 = vsyncpa %s8, 0
    %10 = vsyncpa [#allocation6], 0
    %s11 = scalar_lea.sflag [#allocation6], 1
    %12 = vsyncpa %s11, 0
    %13 = vsyncpa [#allocation4], 0
    %s14 = scalar_lea.sflag [#allocation4], 1
    %15 = vsyncpa %s14, 0
    loop: start=0, step=1, limit=4
    $region2: #{tpu_custom_call.1} parent=1 // loop_pre_header
      _
    $region3: #{tpu_custom_call.1} parent=1 // loop_header
      %s17 = sphi 0, %s21
      %p18 = scmp.ge.s32.totalorder %s17, 4
      %s24 = sphi 0, %s36
      %s25 = sphi 0, %s32
      %s26 = sphi 0, %s24
      %s27 = sphi 0, %s25
      %s28 = sphi 0, %s26
      %s29 = sphi 0, %s27
      %s41 = sphi 0, %s43
      %s44 = sphi 0, %s41
      %s45 = sphi 0, %s44
      %s61 = sphi 0, %s45
      %s69 = sphi 0, %s71
      %s72 = sphi 0, %s69
      %s73 = sphi 0, %s72
      %s89 = sphi 0, %s73
      %s95 = sphi 0, %s97
      %s98 = sphi 0, %s95
      %s99 = sphi 0, %s98
      %s115 = sphi 0, %s99
    $region4: #{tpu_custom_call.1} parent=1 // loop_header_branch
      %20 = sbr.rel (%p18) target = $region8
    $region5: #{tpu_custom_call.1} parent=1 // loop_body
      %s22 = ssub.s32 %s17, 1
      %s23 = ssub.s32 %s17, 2
      %s30 = sadd.s32 1, %s25
      %p31 = scmp.ge.s32.totalorder %s30, 1
      %s32 = scalar_select %p31, 0, %s30
      %s33 = sadd.s32 1, %s24
      %s34 = scalar_select %p31, %s33, %s24
      %p35 = scmp.ge.s32.totalorder %s34, 2
      %s36 = scalar_select %p35, 0, %s34
      %s37 = sadd.s32 %s24, %s25
      %s38 = sadd.s32 %s36, %s32
      %s39 = ssub.s32 %s37, %s38
      %p40 = scmp.eq.s32.totalorder %s39, 0
      %s42 = sadd.s32 %s41, 1
      %s43 = scalar_select %p40, %s41, %s42
      %p46 = pneg %p40
      %p47 = scmp.eq.s32.totalorder %s17, 1
      %p48 = por %p46, %p47
      %p49 = scmp.ne.s32.totalorder %s41, %s44
      %p50 = scmp.eq.s32.totalorder %s17, 0
      %p51 = por %p49, %p50
      %p52 = scmp.ne.s32.totalorder %s41, %s44
      %p53 = scmp.eq.s32.totalorder %s22, 1
      %p54 = por %p52, %p53
      %p55 = scmp.ne.s32.totalorder %s44, %s45
      %p56 = scmp.eq.s32.totalorder %s22, 0
      %p57 = por %p55, %p56
      %p58 = scmp.ne.s32.totalorder %s44, %s45
      %p59 = scmp.eq.s32.totalorder %s23, 1
      %p60 = por %p58, %p59
      %p62 = scmp.ne.s32.totalorder %s45, %s61
      %p63 = scmp.eq.s32.totalorder %s23, 0
      %p64 = por %p62, %p63
      %s65 = sadd.s32 %s24, %s25
      %s66 = sadd.s32 %s36, %s32
      %s67 = ssub.s32 %s65, %s66
      %p68 = scmp.eq.s32.totalorder %s67, 0
      %s70 = sadd.s32 %s69, 1
      %s71 = scalar_select %p68, %s69, %s70
      %p74 = pneg %p68
      %p75 = scmp.eq.s32.totalorder %s17, 1
      %p76 = por %p74, %p75
      %p77 = scmp.ne.s32.totalorder %s69, %s72
      %p78 = scmp.eq.s32.totalorder %s17, 0
      %p79 = por %p77, %p78
      %p80 = scmp.ne.s32.totalorder %s69, %s72
      %p81 = scmp.eq.s32.totalorder %s22, 1
      %p82 = por %p80, %p81
      %p83 = scmp.ne.s32.totalorder %s72, %s73
      %p84 = scmp.eq.s32.totalorder %s22, 0
      %p85 = por %p83, %p84
      %p86 = scmp.ne.s32.totalorder %s72, %s73
      %p87 = scmp.eq.s32.totalorder %s23, 1
      %p88 = por %p86, %p87
      %p90 = scmp.ne.s32.totalorder %s73, %s89
      %p91 = scmp.eq.s32.totalorder %s23, 0
      %p92 = por %p90, %p91
      %s93 = ssub.s32 %s24, %s36
      %p94 = scmp.eq.s32.totalorder %s93, 0
      %s96 = sadd.s32 %s95, 1
      %s97 = scalar_select %p94, %s95, %s96
      %p100 = pneg %p94
      %p101 = scmp.eq.s32.totalorder %s17, 1
      %p102 = por %p100, %p101
      %p103 = scmp.ne.s32.totalorder %s95, %s98
      %p104 = scmp.eq.s32.totalorder %s17, 0
      %p105 = por %p103, %p104
      %p106 = scmp.ne.s32.totalorder %s95, %s98
      %p107 = scmp.eq.s32.totalorder %s22, 1
      %p108 = por %p106, %p107
      %p109 = scmp.ne.s32.totalorder %s98, %s99
      %p110 = scmp.eq.s32.totalorder %s22, 0
      %p111 = por %p109, %p110
      %p112 = scmp.ne.s32.totalorder %s98, %s99
      %p113 = scmp.eq.s32.totalorder %s23, 1
      %p114 = por %p112, %p113
      %p116 = scmp.ne.s32.totalorder %s99, %s115
      %p117 = scmp.eq.s32.totalorder %s23, 0
      %p118 = por %p116, %p117
      %p119 = scmp.le.s32.totalorder 1, %s17
      %p120 = scmp.lt.s32.totalorder %s17, 3
      %p121 = pnand %p119, %p120
      %p122 = pneg %p121
      // Predicated region
      $region9: #{tpu_custom_call.1} parent=5 // pred_check
        _
      $region10: #{tpu_custom_call.1} parent=5 // pred_check_branch
        %124 = sbr.rel (%p121) target = $region12
      $region11: #{tpu_custom_call.1} parent=5 // pred_region
        %s125 = ssub.s32 %s17, 1
      $region12: #{tpu_custom_call.1} parent=5 // pred_fallthru
        _
      %p126 = scmp.lt.s32.totalorder %s17, 2
      // Predicated region
      $region13: #{tpu_custom_call.1} parent=5 // pred_check
        %p127 = pneg %p126
      $region14: #{tpu_custom_call.1} parent=5 // pred_check_branch
        %129 = sbr.rel (%p127) target = $region16
      $region15: #{tpu_custom_call.1} parent=5 // pred_region
        // Predicated region
        $region17: #{tpu_custom_call.1} parent=15 // pred_check
          %p130 = pneg %p51
        $region18: #{tpu_custom_call.1} parent=15 // pred_check_branch
          %132 = sbr.rel (%p130) target = $region20
        $region19: #{tpu_custom_call.1} parent=15 // pred_region
          %s133 = sand.u32 %s41, 1
          %s134 = scalar_lea.sflag [#allocation3], %s133
          %s135 = sand.u32 %s41, 1
          %s136 = smul.addr %s135, 8
          %s137 = scalar_lea.vmem [#allocation2], %s136
          %s138 = sadd.s32 %s24, %s25
          %s140 = ssub.s32 128, 128
          %141 = vsyncadd %s134, %s140
          %s142 = smul.addr %s138, 128
          %s143 = scalar_lea.hbm %s0, %s142
          %s145 = sshll.u32 %s137, 4
          %s146 = int_to_ptr.vmem [resolvable:$true] %s145
          %148 = dma.hbm_to_vmem [thread:$0]  %s143, 128, %s146, %s134
        $region20: #{tpu_custom_call.1} parent=15 // pred_fallthru
          _
        // Predicated region
        $region21: #{tpu_custom_call.1} parent=15 // pred_check
          %p149 = pneg %p79
        $region22: #{tpu_custom_call.1} parent=15 // pred_check_branch
          %151 = sbr.rel (%p149) target = $region24
        $region23: #{tpu_custom_call.1} parent=15 // pred_region
          %s152 = sand.u32 %s69, 1
          %s153 = scalar_lea.sflag [#allocation6], %s152
          %s154 = sand.u32 %s69, 1
          %s155 = smul.addr %s154, 8
          %s156 = scalar_lea.vmem [#allocation5], %s155
          %s157 = sadd.s32 %s24, %s25
          %s159 = ssub.s32 128, 128
          %160 = vsyncadd %s153, %s159
          %s161 = smul.addr %s157, 128
          %s162 = scalar_lea.hbm %s1, %s161
          %s164 = sshll.u32 %s156, 4
          %s165 = int_to_ptr.vmem [resolvable:$true] %s164
          %167 = dma.hbm_to_vmem [thread:$0]  %s162, 128, %s165, %s153
        $region24: #{tpu_custom_call.1} parent=15 // pred_fallthru
          _
      $region16: #{tpu_custom_call.1} parent=5 // pred_fallthru
        _
      %p168 = scmp.le.s32.totalorder 1, %s17
      %p169 = scmp.lt.s32.totalorder %s17, 3
      %p170 = pnand %p168, %p169
      %p171 = pneg %p170
      // Predicated region
      $region25: #{tpu_custom_call.1} parent=5 // pred_check
        _
      $region26: #{tpu_custom_call.1} parent=5 // pred_check_branch
        %173 = sbr.rel (%p170) target = $region28
      $region27: #{tpu_custom_call.1} parent=5 // pred_region
        %s174 = ssub.s32 %s17, 1
        %s175 = sand.u32 %s44, 1
        %s176 = scalar_lea.sflag [#allocation3], %s175
        %s177 = sand.u32 %s44, 1
        %s178 = smul.addr %s177, 8
        %s179 = scalar_lea.vmem [#allocation2], %s178
        // Predicated region
        $region29: #{tpu_custom_call.1} parent=27 // pred_check
          %p180 = pneg %p57
        $region30: #{tpu_custom_call.1} parent=27 // pred_check_branch
          %182 = sbr.rel (%p180) target = $region32
        $region31: #{tpu_custom_call.1} parent=27 // pred_region
          %183 = dma.done %s176, 128
        $region32: #{tpu_custom_call.1} parent=27 // pred_fallthru
          _
        %s184 = sand.u32 %s72, 1
        %s185 = scalar_lea.sflag [#allocation6], %s184
        %s186 = sand.u32 %s72, 1
        %s187 = smul.addr %s186, 8
        %s188 = scalar_lea.vmem [#allocation5], %s187
        // Predicated region
        $region33: #{tpu_custom_call.1} parent=27 // pred_check
          %p189 = pneg %p85
        $region34: #{tpu_custom_call.1} parent=27 // pred_check_branch
          %191 = sbr.rel (%p189) target = $region36
        $region35: #{tpu_custom_call.1} parent=27 // pred_region
          %192 = dma.done %s185, 128
        $region36: #{tpu_custom_call.1} parent=27 // pred_fallthru
          _
        %s193 = sand.u32 %s44, 1
        %s194 = scalar_lea.sflag [#allocation3], %s193
        %s195 = sand.u32 %s44, 1
        %s196 = smul.addr %s195, 8
        %s197 = scalar_lea.vmem [#allocation2], %s196
        %p198 = pneg %p57
        %p199 = pneg %p54
        %s200 = sand.u32 %s72, 1
        %s201 = scalar_lea.sflag [#allocation6], %s200
        %s202 = sand.u32 %s72, 1
        %s203 = smul.addr %s202, 8
        %s204 = scalar_lea.vmem [#allocation5], %s203
        %p205 = pneg %p85
        %p206 = pneg %p82
        %p207 = pneg %p111
        %p208 = pneg %p108
        %s209 = sand.u32 %s98, 1
        %s210 = scalar_lea.sflag [#allocation4], %s209
        %s211 = sand.u32 %s98, 1
        %s212 = smul.addr %s211, 8
        %s213 = scalar_lea.vmem [#allocation7], %s212
        %s214 = sadd.s32 %s26, %s27
        %s215 = sadd.s32 %s26, %s27
        %p216 = scmp.eq.s32.totalorder %s27, 0
        // Predicated region
        $region37: #{tpu_custom_call.1} parent=27 // pred_check
          %p217 = pneg %p216
        $region38: #{tpu_custom_call.1} parent=27 // pred_check_branch
          %219 = sbr.rel (%p217) target = $region40
        $region39: #{tpu_custom_call.1} parent=27 // pred_region
          %vm220 = vcmask 64512
          %221 = vst.msk [vmem:[%s213] sm:$0xff] %vm220, 0.0
        $region40: #{tpu_custom_call.1} parent=27 // pred_fallthru
          _
        %v222 = vld [vmem:[%s179] sm:$0xff]
        %v223 = vld [vmem:[%s188] sm:$0xff]
        %v224 = vsub.f32 %v222, %v223
        %v225 = vadd.f32 %v222, %v223
        %226 = vmatprep.subr.mxu0 0.0
        %227 = vmatpush1.xpose.msra.mxu0 %v225
        %228 = vmatprep.subr.mxu0 0.0
        %229 = vmatpush1.xpose.msra.mxu0 0.0
        %230 = vmatprep.subr.mxu0 0.0
        %231 = vmatpush1.xpose.msra.mxu0 0.0
        %232 = vmatprep.subr.mxu0 0.0
        %233 = vmatpush1.xpose.msra.mxu0 0.0
        %234 = vmatprep.subr.mxu0 0.0
        %235 = vmatpush1.xpose.msra.mxu0 0.0
        %236 = vmatprep.subr.mxu0 0.0
        %237 = vmatpush1.xpose.msra.mxu0 0.0
        %238 = vmatprep.subr.mxu0 0.0
        %239 = vmatpush1.xpose.msra.mxu0 0.0
        %240 = vmatprep.subr.mxu0 0.0
        %241 = vmatpush1.xpose.msra.mxu0 0.0
        %242 = vmatprep.subr.mxu0 0.0
        %243 = vmatpush1.xpose.msra.mxu0 0.0
        %244 = vmatprep.subr.mxu0 0.0
        %245 = vmatpush1.xpose.msra.mxu0 0.0
        %246 = vmatprep.subr.mxu0 0.0
        %247 = vmatpush1.xpose.msra.mxu0 0.0
        %248 = vmatprep.subr.mxu0 0.0
        %249 = vmatpush1.xpose.msra.mxu0 0.0
        %250 = vmatprep.subr.mxu0 0.0
        %251 = vmatpush1.xpose.msra.mxu0 0.0
        %252 = vmatprep.subr.mxu0 0.0
        %253 = vmatpush1.xpose.msra.mxu0 0.0
        %254 = vmatprep.subr.mxu0 0.0
        %255 = vmatpush1.xpose.msra.mxu0 0.0
        %256 = vmatprep.subr.mxu0 0.0
        %257 = vmatpush1.xpose.msra.mxu0 0.0
        %258 = vmatprep.subr.mxu0 0.0
        %259 = vmatpush1.xpose.msra.mxu0 0.0
        %260 = vmatprep.subr.mxu0 0.0
        %261 = vmatpush1.xpose.msra.mxu0 0.0
        %262 = vmatprep.subr.mxu0 0.0
        %263 = vmatpush1.xpose.msra.mxu0 0.0
        %264 = vmatprep.subr.mxu0 0.0
        %265 = vmatpush1.xpose.msra.mxu0 0.0
        %266 = vmatprep.subr.mxu0 0.0
        %267 = vmatpush1.xpose.msra.mxu0 0.0
        %268 = vmatprep.subr.mxu0 0.0
        %269 = vmatpush1.xpose.msra.mxu0 0.0
        %270 = vmatprep.subr.mxu0 0.0
        %271 = vmatpush1.xpose.msra.mxu0 0.0
        %272 = vmatprep.subr.mxu0 0.0
        %273 = vmatpush1.xpose.msra.mxu0 0.0
        %274 = vmatprep.subr.mxu0 0.0
        %275 = vmatpush1.xpose.msra.mxu0 0.0
        %276 = vmatprep.subr.mxu0 0.0
        %277 = vmatpush1.xpose.msra.mxu0 0.0
        %278 = vmatprep.subr.mxu0 0.0
        %279 = vmatpush1.xpose.msra.mxu0 0.0
        %280 = vmatprep.subr.mxu0 0.0
        %281 = vmatpush1.xpose.msra.mxu0 0.0
        %282 = vmatprep.subr.mxu0 0.0
        %283 = vmatpush1.xpose.msra.mxu0 0.0
        %284 = vmatprep.subr.mxu0 0.0
        %285 = vmatpush1.xpose.msra.mxu0 0.0
        %286 = vmatprep.subr.mxu0 0.0
        %287 = vmatpush1.xpose.msra.mxu0 0.0
        %288 = vmatprep.subr.mxu0 0.0
        %289 = vmatpush1.xpose.msra.mxu0 0.0
        %290 = vmatprep.mubr.f32.mxu0 0.0
        %291 = vmatmul.mubr.f32.gmra.mrb[0].mxu0 %v224
        %v292 = vpop.f32.mrb[0].mxu0
        %v293 = vadd.f32 0.0, %v292
        %v294 = vpop.f32.mrb[0].mxu0
        %295 = vdwg.mxu0
        %v296 = vld [vmem:[%s213] sm:$0xff]
        %v297 = vadd.f32 %v296, %v293
        %vm298 = vcmask 64512
        %299 = vst.msk [vmem:[%s213] sm:$0xff] %vm298, %v297
        %s300 = sand.u32 %s98, 1
        %s301 = scalar_lea.sflag [#allocation4], %s300
        %s302 = sand.u32 %s98, 1
        %s303 = smul.addr %s302, 8
        %s304 = scalar_lea.vmem [#allocation7], %s303
        // Predicated region
        $region41: #{tpu_custom_call.1} parent=27 // pred_check
          %p305 = pneg %p108
        $region42: #{tpu_custom_call.1} parent=27 // pred_check_branch
          %307 = sbr.rel (%p305) target = $region44
        $region43: #{tpu_custom_call.1} parent=27 // pred_region
          %s309 = ssub.s32 128, 128
          %310 = vsyncadd %s301, %s309
          %s311 = smul.addr %s26, 128
          %s312 = scalar_lea.hbm %s2, %s311
          %s314 = sshll.u32 %s304, 4
          %s315 = int_to_ptr.vmem [resolvable:$true] %s314
          %317 = dma.vmem_to_hbm [thread:$0]  %s315, 128, %s312, %s301
        $region44: #{tpu_custom_call.1} parent=27 // pred_fallthru
          _
      $region28: #{tpu_custom_call.1} parent=5 // pred_fallthru
        _
      %p318 = scmp.le.s32.totalorder 2, %s17
      // Predicated region
      $region45: #{tpu_custom_call.1} parent=5 // pred_check
        %p319 = pneg %p318
      $region46: #{tpu_custom_call.1} parent=5 // pred_check_branch
        %321 = sbr.rel (%p319) target = $region48
      $region47: #{tpu_custom_call.1} parent=5 // pred_region
        %s322 = ssub.s32 %s17, 2
        // Predicated region
        $region49: #{tpu_custom_call.1} parent=47 // pred_check
          %p323 = pneg %p114
        $region50: #{tpu_custom_call.1} parent=47 // pred_check_branch
          %325 = sbr.rel (%p323) target = $region52
        $region51: #{tpu_custom_call.1} parent=47 // pred_region
          %s326 = sand.u32 %s99, 1
          %s327 = scalar_lea.sflag [#allocation4], %s326
          %s328 = sand.u32 %s99, 1
          %s329 = smul.addr %s328, 8
          %s330 = scalar_lea.vmem [#allocation7], %s329
          %331 = dma.done %s327, 128
        $region52: #{tpu_custom_call.1} parent=47 // pred_fallthru
          _
      $region48: #{tpu_custom_call.1} parent=5 // pred_fallthru
        _
    $region6: #{tpu_custom_call.1} parent=1 // loop_footer
      %s21 = sadd.s32 1, %s17
    $region7: #{tpu_custom_call.1} parent=1 // loop_footer_branch
      %16 = sbr.rel target = $region3
    $region8: #{tpu_custom_call.1} parent=1 // loop_exit
      _
    %332 = vsyncpa [#allocation3], 1
    %s333 = scalar_lea.sflag [#allocation3], 1
    %334 = vsyncpa %s333, 1
    %335 = vsyncpa [#allocation6], 1
    %s336 = scalar_lea.sflag [#allocation6], 1
    %337 = vsyncpa %s336, 1
    %338 = vsyncpa [#allocation4], 1
    %s339 = scalar_lea.sflag [#allocation4], 1
    %340 = vsyncpa %s339, 1

</llo_original>
